<compile_context>
chip_gen: v6e
topology: v6e:2x2x1
jax: 0.10.0
libtpu: 0.0.40
codegen_flags: <defaults>
</compile_context>

<pallas_src>
import jax
import jax.numpy as jnp
from jax.experimental import pallas as pl
from jax.experimental.pallas import tpu as pltpu


def _round_up(x, m):
    return ((x + m - 1) // m) * m


def _pad2(a, rows, cols):
    return jnp.pad(a, ((0, rows - a.shape[0]), (0, cols - a.shape[1])))


def vae_encoder_kernel(x_ref, w1_ref, b1_ref, w2_ref, b2_ref, wh_ref, bh_ref, eps_ref,
                       z_ref, mu_ref, lv_ref):
    cdt = w1_ref.dtype  # matmul operand dtype (f32 or bf16); accumulation is always f32
    x = x_ref[...].astype(cdt)

    # encoder: Linear + ReLU (Dropout = identity at inference)
    h1 = jnp.dot(x, w1_ref[...], preferred_element_type=jnp.float32) + b1_ref[...]
    h1 = jnp.maximum(h1, 0.0)

    h2 = jnp.dot(h1.astype(cdt), w2_ref[...], preferred_element_type=jnp.float32) + b2_ref[...]
    h2 = jnp.maximum(h2, 0.0)

    # fused mu|logvar head: a single MXU matmul, split at a 128-lane boundary
    head = jnp.dot(h2.astype(cdt), wh_ref[...], preferred_element_type=jnp.float32) + bh_ref[...]
    lp = lv_ref.shape[-1]
    mu = head[:, :lp]
    lv = head[:, lp:]

    # reparameterization: z = mu + eps * exp(0.5 * logvar)
    std = jnp.exp(0.5 * lv)
    z = mu + eps_ref[...] * std

    z_ref[...] = z.astype(z_ref.dtype)
    mu_ref[...] = mu.astype(mu_ref.dtype)
    lv_ref[...] = lv.astype(lv_ref.dtype)


def pack_params(params, weight_dtype=jnp.float32):
    """Zero-pad every feature dim to a multiple of 128, fuse the mu|logvar heads into one
    [H2p, 2*Lp] weight, and optionally cast weights to bf16 (biases stay f32)."""
    din, hid = params["w1"].shape
    h2 = params["w2"].shape[1]
    lat = params["wmu"].shape[1]
    din_p, h_p = _round_up(din, 128), _round_up(hid, 128)
    h2_p, l_p = _round_up(h2, 128), _round_up(lat, 128)

    packed = {
        "w1": _pad2(params["w1"], din_p, h_p).astype(weight_dtype),
        "b1": _pad2(params["b1"], 1, h_p).astype(jnp.float32),
        "w2": _pad2(params["w2"], h_p, h2_p).astype(weight_dtype),
        "b2": _pad2(params["b2"], 1, h2_p).astype(jnp.float32),
        "wh": jnp.concatenate(
            [_pad2(params["wmu"], h2_p, l_p), _pad2(params["wlv"], h2_p, l_p)], axis=1
        ).astype(weight_dtype),
        "bh": jnp.concatenate(
            [_pad2(params["bmu"], 1, l_p), _pad2(params["blv"], 1, l_p)], axis=1
        ).astype(jnp.float32),
    }
    meta = dict(input_dim=din, latent_dim=lat, din_p=din_p, h_p=h_p, h2_p=h2_p, l_p=l_p)
    return packed, meta


def vae_encoder(x, packed, meta, eps, *, tile_m=512):
    """x: [B, input_dim] f32, eps: [B, latent_dim] f32 -> (z, mu, logvar), each [B, latent_dim]."""
    B = x.shape[0]
    lat = meta["latent_dim"]
    din_p, h_p, h2_p, l_p = meta["din_p"], meta["h_p"], meta["h2_p"], meta["l_p"]

    # batch tile: multiple of 8 (f32 sublane); 256-512 for large batches
    tm = min(tile_m, _round_up(B, 8))
    b_p = _round_up(B, tm)
    grid = (b_p // tm,)

    x_p = _pad2(x.astype(jnp.float32), b_p, din_p)
    eps_p = _pad2(eps.astype(jnp.float32), b_p, l_p)

    def resident(arr):
        # constant block index -> weight/bias stays VMEM-resident across the batch grid
        return pl.BlockSpec(arr.shape, lambda i: (0, 0))

    def tile_spec(f):
        return pl.BlockSpec((tm, f), lambda i: (i, 0))

    flops = 2 * b_p * (din_p * h_p + h_p * h2_p + h2_p * 2 * l_p)
    weight_bytes = sum(int(a.size) * a.dtype.itemsize for a in packed.values())
    bytes_accessed = int(x_p.size * 4 + eps_p.size * 4 + weight_bytes + 3 * b_p * l_p * 4)

    out_shape = tuple(jax.ShapeDtypeStruct((b_p, l_p), jnp.float32) for _ in range(3))

    z, mu, lv = pl.pallas_call(
        vae_encoder_kernel,
        out_shape=out_shape,
        grid_spec=pltpu.PrefetchScalarGridSpec(
            num_scalar_prefetch=0,
            grid=grid,
            in_specs=[
                tile_spec(din_p),
                resident(packed["w1"]), resident(packed["b1"]),
                resident(packed["w2"]), resident(packed["b2"]),
                resident(packed["wh"]), resident(packed["bh"]),
                tile_spec(l_p),
            ],
            out_specs=[tile_spec(l_p), tile_spec(l_p), tile_spec(l_p)],
        ),
        compiler_params=pltpu.CompilerParams(
            dimension_semantics=("parallel",),      # shard batch tiles across TCs (v7x)
            vmem_limit_bytes=32 * 1024 * 1024,      # explicit budget; fits v7x's 64 MiB VMEM
        ),
        cost_estimate=pl.CostEstimate(
            flops=flops, transcendentals=b_p * l_p, bytes_accessed=bytes_accessed),
    )(x_p, packed["w1"], packed["b1"], packed["w2"], packed["b2"],
      packed["wh"], packed["bh"], eps_p)

    return z[:B, :lat], mu[:B, :lat], lv[:B, :lat]


def init_params(key, input_dim, hidden_dim, latent_dim):
    """Deterministic synthetic init mimicking nn.Linear shapes (weights stored [in, out])."""
    h2 = hidden_dim // 2
    keys = jax.random.split(key, 8)

    def lin(kw, kb, fan_in, fan_out):
        bound = 1.0 / jnp.sqrt(fan_in)
        w = jax.random.uniform(kw, (fan_in, fan_out), jnp.float32, -bound, bound)
        b = jax.random.uniform(kb, (1, fan_out), jnp.float32, -bound, bound)
        return w, b

    w1, b1 = lin(keys[0], keys[1], input_dim, hidden_dim)
    w2, b2 = lin(keys[2], keys[3], hidden_dim, h2)
    wmu, bmu = lin(keys[4], keys[5], h2, latent_dim)
    wlv, blv = lin(keys[6], keys[7], h2, latent_dim)
    return {"w1": w1, "b1": b1, "w2": w2, "b2": b2,
            "wmu": wmu, "bmu": bmu, "wlv": wlv, "blv": blv}


def reference(x, params, eps, compute_dtype=jnp.float32):
    """Pure-JAX reference, mirroring the kernel's operand dtype and f32 accumulation."""
    cdt = compute_dtype

    def lin(a, w, b):
        return jnp.dot(a.astype(cdt), w.astype(cdt),
                       preferred_element_type=jnp.float32) + b

    h1 = jnp.maximum(lin(x, params["w1"], params["b1"]), 0.0)
    h2 = jnp.maximum(lin(h1, params["w2"], params["b2"]), 0.0)
    mu = lin(h2, params["wmu"], params["bmu"])
    lv = lin(h2, params["wlv"], params["blv"])
    z = mu + eps * jnp.exp(0.5 * lv)
    return z, mu, lv


if __name__ == "__main__":
    input_dim, hidden_dim, latent_dim = 32, 32, 8
    batch = 8

    key = jax.random.PRNGKey(0)
    k_param, k_x, k_eps, k_x2, k_eps2 = jax.random.split(key, 5)

    params = init_params(k_param, input_dim, hidden_dim, latent_dim)
    x = jax.random.normal(k_x, (batch, input_dim), jnp.float32)
    # eps for the reparameterization trick (torch.randn_like(std) equivalent)
    eps = jax.random.normal(k_eps, (batch, latent_dim), jnp.float32)

    # ---- f32 weights: exact check against the f32 reference --------------------------
    packed, meta = pack_params(params, weight_dtype=jnp.float32)
    z, mu, logvar = vae_encoder(x, packed, meta, eps)
    jax.block_until_ready((z, mu, logvar))

    z_ref, mu_ref, lv_ref = reference(x, params, eps)
    assert jnp.allclose(z, z_ref, atol=1e-4, rtol=1e-4)
    assert jnp.allclose(mu, mu_ref, atol=1e-4, rtol=1e-4)
    assert jnp.allclose(logvar, lv_ref, atol=1e-4, rtol=1e-4)

    # ---- larger batch: exercises the multi-tile batch grid with resident weights -----
    big_b = 1024
    xb = jax.random.normal(k_x2, (big_b, input_dim), jnp.float32)
    epsb = jax.random.normal(k_eps2, (big_b, latent_dim), jnp.float32)
    zb, mub, lvb = vae_encoder(xb, packed, meta, epsb, tile_m=256)   # grid=(4,)
    jax.block_until_ready((zb, mub, lvb))
    zb_ref, mub_ref, lvb_ref = reference(xb, params, epsb)
    assert jnp.allclose(zb, zb_ref, atol=1e-4, rtol=1e-4)
    assert jnp.allclose(mub, mub_ref, atol=1e-4, rtol=1e-4)
    assert jnp.allclose(lvb, lvb_ref, atol=1e-4, rtol=1e-4)

    # ---- bf16 weights/operands (recommended on v6e/v7x), f32 accumulation ------------
    packed16, meta16 = pack_params(params, weight_dtype=jnp.bfloat16)
    z16, mu16, lv16 = vae_encoder(x, packed16, meta16, eps)
    jax.block_until_ready((z16, mu16, lv16))
    z16_ref, mu16_ref, lv16_ref = reference(x, params, eps, compute_dtype=jnp.bfloat16)
    assert jnp.allclose(z16, z16_ref, atol=1e-3, rtol=1e-3)
    assert jnp.allclose(mu16, mu16_ref, atol=1e-3, rtol=1e-3)
    assert jnp.allclose(lv16, lv16_ref, atol=1e-3, rtol=1e-3)

    print("KERNEL_OK")
</pallas_src>

<mosaic_0001>
module attributes {stable_mosaic.version = 11 : i64} {
  func.func @vae_encoder_kernel(%arg0: i32, %arg1: memref<8x128xf32, #tpu.memory_space<vmem>>, %arg2: memref<128x128xf32, #tpu.memory_space<vmem>>, %arg3: memref<1x128xf32, #tpu.memory_space<vmem>>, %arg4: memref<128x128xf32, #tpu.memory_space<vmem>>, %arg5: memref<1x128xf32, #tpu.memory_space<vmem>>, %arg6: memref<128x256xf32, #tpu.memory_space<vmem>>, %arg7: memref<1x256xf32, #tpu.memory_space<vmem>>, %arg8: memref<8x128xf32, #tpu.memory_space<vmem>>, %arg9: memref<8x128xf32, #tpu.memory_space<vmem>>, %arg10: memref<8x128xf32, #tpu.memory_space<vmem>>, %arg11: memref<8x128xf32, #tpu.memory_space<vmem>>) attributes {dimension_semantics = [#tpu.dimension_semantics<parallel>], iteration_bounds = array<i64: 1>, scalar_prefetch = 0 : i64, scratch_operands = 0 : i64, tpu.core_type = #tpu.core_type<tc>, window_params = [{transform_indices = @transform_0, window_bounds = array<i64: 8, 128>}, {pipeline_mode = #tpu.pipeline_mode<synchronous>, transform_indices = @transform_1, window_bounds = array<i64: 128, 128>}, {pipeline_mode = #tpu.pipeline_mode<synchronous>, transform_indices = @transform_2, window_bounds = array<i64: 1, 128>}, {pipeline_mode = #tpu.pipeline_mode<synchronous>, transform_indices = @transform_3, window_bounds = array<i64: 128, 128>}, {pipeline_mode = #tpu.pipeline_mode<synchronous>, transform_indices = @transform_4, window_bounds = array<i64: 1, 128>}, {pipeline_mode = #tpu.pipeline_mode<synchronous>, transform_indices = @transform_5, window_bounds = array<i64: 128, 256>}, {pipeline_mode = #tpu.pipeline_mode<synchronous>, transform_indices = @transform_6, window_bounds = array<i64: 1, 256>}, {transform_indices = @transform_7, window_bounds = array<i64: 8, 128>}, {transform_indices = @transform_8, window_bounds = array<i64: 8, 128>}, {transform_indices = @transform_9, window_bounds = array<i64: 8, 128>}, {transform_indices = @transform_10, window_bounds = array<i64: 8, 128>}]} {
    %c0 = arith.constant 0 : index
    %c0_0 = arith.constant 0 : index
    %0 = vector.load %arg1[%c0, %c0_0] : memref<8x128xf32, #tpu.memory_space<vmem>>, vector<8x128xf32>
    %c0_1 = arith.constant 0 : index
    %c0_2 = arith.constant 0 : index
    %1 = vector.load %arg2[%c0_1, %c0_2] : memref<128x128xf32, #tpu.memory_space<vmem>>, vector<128x128xf32>
    %cst = arith.constant dense<0.000000e+00> : vector<8x128xf32>
    %2 = tpu.matmul %0, %1, %cst {dimension_numbers = #tpu.dot_dimension_numbers<[1], [0], [0], [1], [0, 0, 1, 1], [], []>} : vector<8x128xf32>, vector<128x128xf32>, vector<8x128xf32> -> vector<8x128xf32>
    %c0_3 = arith.constant 0 : index
    %c0_4 = arith.constant 0 : index
    %3 = vector.load %arg3[%c0_3, %c0_4] : memref<1x128xf32, #tpu.memory_space<vmem>>, vector<1x128xf32>
    %4 = vector.broadcast %3 : vector<1x128xf32> to vector<8x128xf32>
    %5 = arith.addf %2, %4 : vector<8x128xf32>
    %cst_5 = arith.constant 0.000000e+00 : f32
    %6 = vector.broadcast %cst_5 : f32 to vector<8x128xf32>
    %7 = arith.maximumf %5, %6 : vector<8x128xf32>
    %c0_6 = arith.constant 0 : index
    %c0_7 = arith.constant 0 : index
    %8 = vector.load %arg4[%c0_6, %c0_7] : memref<128x128xf32, #tpu.memory_space<vmem>>, vector<128x128xf32>
    %cst_8 = arith.constant dense<0.000000e+00> : vector<8x128xf32>
    %9 = tpu.matmul %7, %8, %cst_8 {dimension_numbers = #tpu.dot_dimension_numbers<[1], [0], [0], [1], [0, 0, 1, 1], [], []>} : vector<8x128xf32>, vector<128x128xf32>, vector<8x128xf32> -> vector<8x128xf32>
    %c0_9 = arith.constant 0 : index
    %c0_10 = arith.constant 0 : index
    %10 = vector.load %arg5[%c0_9, %c0_10] : memref<1x128xf32, #tpu.memory_space<vmem>>, vector<1x128xf32>
    %11 = vector.broadcast %10 : vector<1x128xf32> to vector<8x128xf32>
    %12 = arith.addf %9, %11 : vector<8x128xf32>
    %cst_11 = arith.constant 0.000000e+00 : f32
    %13 = vector.broadcast %cst_11 : f32 to vector<8x128xf32>
    %14 = arith.maximumf %12, %13 : vector<8x128xf32>
    %c0_12 = arith.constant 0 : index
    %c0_13 = arith.constant 0 : index
    %15 = vector.load %arg6[%c0_12, %c0_13] : memref<128x256xf32, #tpu.memory_space<vmem>>, vector<128x256xf32>
    %cst_14 = arith.constant dense<0.000000e+00> : vector<8x256xf32>
    %16 = tpu.matmul %14, %15, %cst_14 {dimension_numbers = #tpu.dot_dimension_numbers<[1], [0], [0], [1], [0, 0, 1, 1], [], []>} : vector<8x128xf32>, vector<128x256xf32>, vector<8x256xf32> -> vector<8x256xf32>
    %c0_15 = arith.constant 0 : index
    %c0_16 = arith.constant 0 : index
    %17 = vector.load %arg7[%c0_15, %c0_16] : memref<1x256xf32, #tpu.memory_space<vmem>>, vector<1x256xf32>
    %18 = vector.broadcast %17 : vector<1x256xf32> to vector<8x256xf32>
    %19 = arith.addf %16, %18 : vector<8x256xf32>
    %20 = vector.extract_strided_slice %19 {offsets = [0, 0], sizes = [8, 128], strides = [1, 1]} : vector<8x256xf32> to vector<8x128xf32>
    %21 = vector.extract_strided_slice %19 {offsets = [0, 128], sizes = [8, 128], strides = [1, 1]} : vector<8x256xf32> to vector<8x128xf32>
    %cst_17 = arith.constant 5.000000e-01 : f32
    %22 = vector.broadcast %cst_17 : f32 to vector<8x128xf32>
    %23 = arith.mulf %22, %21 : vector<8x128xf32>
    %24 = math.exp %23 : vector<8x128xf32>
    %c0_18 = arith.constant 0 : index
    %c0_19 = arith.constant 0 : index
    %25 = vector.load %arg8[%c0_18, %c0_19] : memref<8x128xf32, #tpu.memory_space<vmem>>, vector<8x128xf32>
    %26 = arith.mulf %25, %24 : vector<8x128xf32>
    %27 = arith.addf %20, %26 : vector<8x128xf32>
    %c0_20 = arith.constant 0 : index
    %c0_21 = arith.constant 0 : index
    %28 = vector.load %arg9[%c0_20, %c0_21] : memref<8x128xf32, #tpu.memory_space<vmem>>, vector<8x128xf32>
    tpu.vector_store %arg9[%c0_20, %c0_21], %27 {strides = array<i32>} : memref<8x128xf32, #tpu.memory_space<vmem>>, vector<8x128xf32>,
    %c0_22 = arith.constant 0 : index
    %c0_23 = arith.constant 0 : index
    %29 = vector.load %arg10[%c0_22, %c0_23] : memref<8x128xf32, #tpu.memory_space<vmem>>, vector<8x128xf32>
    tpu.vector_store %arg10[%c0_22, %c0_23], %20 {strides = array<i32>} : memref<8x128xf32, #tpu.memory_space<vmem>>, vector<8x128xf32>,
    %c0_24 = arith.constant 0 : index
    %c0_25 = arith.constant 0 : index
    %30 = vector.load %arg11[%c0_24, %c0_25] : memref<8x128xf32, #tpu.memory_space<vmem>>, vector<8x128xf32>
    tpu.vector_store %arg11[%c0_24, %c0_25], %21 {strides = array<i32>} : memref<8x128xf32, #tpu.memory_space<vmem>>, vector<8x128xf32>,
    return
  }
  func.func @transform_0(%arg0: i32) -> (i32, i32) {
    %c0_i32 = arith.constant 0 : i32
    %c0_i32_0 = arith.constant 0 : i32
    return %arg0, %c0_i32 : i32, i32
  }
  func.func @transform_1(%arg0: i32) -> (i32, i32) {
    %c0_i32 = arith.constant 0 : i32
    %c0_i32_0 = arith.constant 0 : i32
    %c0_i32_1 = arith.constant 0 : i32
    return %c0_i32, %c0_i32_0 : i32, i32
  }
  func.func @transform_2(%arg0: i32) -> (i32, i32) {
    %c0_i32 = arith.constant 0 : i32
    %c0_i32_0 = arith.constant 0 : i32
    %c0_i32_1 = arith.constant 0 : i32
    return %c0_i32, %c0_i32_0 : i32, i32
  }
  func.func @transform_3(%arg0: i32) -> (i32, i32) {
    %c0_i32 = arith.constant 0 : i32
    %c0_i32_0 = arith.constant 0 : i32
    %c0_i32_1 = arith.constant 0 : i32
    return %c0_i32, %c0_i32_0 : i32, i32
  }
  func.func @transform_4(%arg0: i32) -> (i32, i32) {
    %c0_i32 = arith.constant 0 : i32
    %c0_i32_0 = arith.constant 0 : i32
    %c0_i32_1 = arith.constant 0 : i32
    return %c0_i32, %c0_i32_0 : i32, i32
  }
  func.func @transform_5(%arg0: i32) -> (i32, i32) {
    %c0_i32 = arith.constant 0 : i32
    %c0_i32_0 = arith.constant 0 : i32
    %c0_i32_1 = arith.constant 0 : i32
    return %c0_i32, %c0_i32_0 : i32, i32
  }
  func.func @transform_6(%arg0: i32) -> (i32, i32) {
    %c0_i32 = arith.constant 0 : i32
    %c0_i32_0 = arith.constant 0 : i32
    %c0_i32_1 = arith.constant 0 : i32
    return %c0_i32, %c0_i32_0 : i32, i32
  }
  func.func @transform_7(%arg0: i32) -> (i32, i32) {
    %c0_i32 = arith.constant 0 : i32
    %c0_i32_0 = arith.constant 0 : i32
    return %arg0, %c0_i32 : i32, i32
  }
  func.func @transform_8(%arg0: i32) -> (i32, i32) {
    %c0_i32 = arith.constant 0 : i32
    %c0_i32_0 = arith.constant 0 : i32
    return %arg0, %c0_i32 : i32, i32
  }
  func.func @transform_9(%arg0: i32) -> (i32, i32) {
    %c0_i32 = arith.constant 0 : i32
    %c0_i32_0 = arith.constant 0 : i32
    return %arg0, %c0_i32 : i32, i32
  }
  func.func @transform_10(%arg0: i32) -> (i32, i32) {
    %c0_i32 = arith.constant 0 : i32
    %c0_i32_0 = arith.constant 0 : i32
    return %arg0, %c0_i32 : i32, i32
  }
}

</mosaic_0001>

<llo_original>
// kernel: tpu_custom_call.1
$region0: #{tpu_custom_call.1}
  #allocation0 [shape = 'u32[]', space=smem, size = 0x4, offset = 0x4, fixed_abs, tag = 'smem constant byte address 0x4 - core index']
  #allocation1 [shape = 'u32[144,128]{1,0:T(1,128)}', space=vmem, size = 0x12000, scoped, tag = 'internal scratch']
  %s0 = inlined_call_operand.hbm [shape: f32[8,128], index: 0, kind: input, shape index: {}]
  %s1 = inlined_call_operand.hbm [shape: f32[128,128], index: 1, kind: input, shape index: {}]
  %s2 = inlined_call_operand.vmem [shape: f32[1,128], index: 2, kind: input, shape index: {}]
  %s3 = inlined_call_operand.hbm [shape: f32[128,128], index: 3, kind: input, shape index: {}]
  %s4 = inlined_call_operand.vmem [shape: f32[1,128], index: 4, kind: input, shape index: {}]
  %s5 = inlined_call_operand.hbm [shape: f32[128,256], index: 5, kind: input, shape index: {}]
  %s6 = inlined_call_operand.vmem [shape: f32[1,256], index: 6, kind: input, shape index: {}]
  %s7 = inlined_call_operand.vmem [shape: f32[8,128], index: 7, kind: input, shape index: {}]
  %s8 = inlined_call_operand.hbm [shape: f32[8,128], index: 8, kind: output, shape index: {0}]
  %s9 = inlined_call_operand.hbm [shape: f32[8,128], index: 9, kind: output, shape index: {1}]
  %s10 = inlined_call_operand.hbm [shape: f32[8,128], index: 10, kind: output, shape index: {2}]
  %11 = xla_tuple %s8, %s9, %s10
  %s12 = sld [smem:[#allocation0]]
  $region74: #{tpu_custom_call.1} parent=0
    _
  %s14 = ssub.s32 1, %s12
  %s15 = scalar_select 0, %s14, %s12
  $region1: #{tpu_custom_call.1} parent=0
    #allocation2 [shape = 'u8[4096]{0}', space=vmem, size = 0x1000, scoped, tag = 'input window, operand 0, single buffered']
    #allocation3 [shape = 's32[1]{0}', space=sflag, size = 0x4, scoped, tag = 'scoped memory for tpu_custom_call.1']
    #allocation4 [shape = 's32[1]{0}', space=sflag, size = 0x4, scoped, tag = 'scoped memory for tpu_custom_call.1']
    #allocation5 [shape = 'u8[65536]{0}', space=vmem, size = 0x10000, scoped, tag = 'input window, operand 1, single buffered']
    #allocation6 [shape = 's32[1]{0}', space=sflag, size = 0x4, scoped, tag = 'scoped memory for tpu_custom_call.1']
    #allocation7 [shape = 'u8[65536]{0}', space=vmem, size = 0x10000, scoped, tag = 'input window, operand 3, single buffered']
    #allocation8 [shape = 'u8[131072]{0}', space=vmem, size = 0x20000, scoped, tag = 'input window, operand 5, single buffered']
    #allocation9 [shape = 's32[1]{0}', space=sflag, size = 0x4, scoped, tag = 'scoped memory for tpu_custom_call.1']
    #allocation10 [shape = 'u8[4096]{0}', space=vmem, size = 0x1000, scoped, tag = 'output window, operand 0, single buffered']
    #allocation11 [shape = 'u8[4096]{0}', space=vmem, size = 0x1000, scoped, tag = 'output window, operand 1, single buffered']
    #allocation12 [shape = 's32[1]{0}', space=sflag, size = 0x4, scoped, tag = 'scoped memory for tpu_custom_call.1']
    #allocation13 [shape = 'u8[4096]{0}', space=vmem, size = 0x1000, scoped, tag = 'output window, operand 2, single buffered']
    %16 = vsyncpa [#allocation3], 0
    %17 = vsyncpa [#allocation6], 0
    %18 = vsyncpa [#allocation9], 0
    %19 = vsyncpa [#allocation4], 0
    %20 = vsyncpa [#allocation12], 0
    // Predicated region
    $region2: #{tpu_custom_call.1} parent=1 // pred_check
      _
    $region3: #{tpu_custom_call.1} parent=1 // pred_check_branch
      %22 = sbr.rel (0) target = $region5
    $region4: #{tpu_custom_call.1} parent=1 // pred_region
      %s24 = ssub.s32 128, 128
      %25 = vsyncadd [#allocation3], %s24
      %s27 = sshll.u32 [#allocation2], 4
      %s28 = int_to_ptr.vmem [resolvable:$true] %s27
      %30 = dma.hbm_to_vmem [thread:$0]  %s0, 128, %s28, [#allocation3]
    $region5: #{tpu_custom_call.1} parent=1 // pred_fallthru
      _
    // Predicated region
    $region6: #{tpu_custom_call.1} parent=1 // pred_check
      _
    $region7: #{tpu_custom_call.1} parent=1 // pred_check_branch
      %32 = sbr.rel (0) target = $region9
    $region8: #{tpu_custom_call.1} parent=1 // pred_region
      %s34 = ssub.s32 2048, 2048
      %35 = vsyncadd [#allocation6], %s34
      %s36 = sshll.u32 [#allocation5], 4
      %s37 = int_to_ptr.vmem [resolvable:$true] %s36
      %42 = dma.hbm_to_vmem [thread:$0]  %s1, 2048, %s37, [#allocation6], 128, 128, 8
    $region9: #{tpu_custom_call.1} parent=1 // pred_fallthru
      _
    // Predicated region
    $region10: #{tpu_custom_call.1} parent=1 // pred_check
      _
    $region11: #{tpu_custom_call.1} parent=1 // pred_check_branch
      %44 = sbr.rel (0) target = $region13
    $region12: #{tpu_custom_call.1} parent=1 // pred_region
      _
    $region13: #{tpu_custom_call.1} parent=1 // pred_fallthru
      _
    // Predicated region
    $region14: #{tpu_custom_call.1} parent=1 // pred_check
      _
    $region15: #{tpu_custom_call.1} parent=1 // pred_check_branch
      %46 = sbr.rel (0) target = $region17
    $region16: #{tpu_custom_call.1} parent=1 // pred_region
      %s48 = ssub.s32 2048, 2048
      %49 = vsyncadd [#allocation6], %s48
      %s50 = sshll.u32 [#allocation7], 4
      %s51 = int_to_ptr.vmem [resolvable:$true] %s50
      %56 = dma.hbm_to_vmem [thread:$0]  %s3, 2048, %s51, [#allocation6], 128, 128, 8
    $region17: #{tpu_custom_call.1} parent=1 // pred_fallthru
      _
    // Predicated region
    $region18: #{tpu_custom_call.1} parent=1 // pred_check
      _
    $region19: #{tpu_custom_call.1} parent=1 // pred_check_branch
      %58 = sbr.rel (0) target = $region21
    $region20: #{tpu_custom_call.1} parent=1 // pred_region
      _
    $region21: #{tpu_custom_call.1} parent=1 // pred_fallthru
      _
    // Predicated region
    $region22: #{tpu_custom_call.1} parent=1 // pred_check
      _
    $region23: #{tpu_custom_call.1} parent=1 // pred_check_branch
      %60 = sbr.rel (0) target = $region25
    $region24: #{tpu_custom_call.1} parent=1 // pred_region
      %s62 = ssub.s32 4096, 4096
      %63 = vsyncadd [#allocation9], %s62
      %s64 = sshll.u32 [#allocation8], 4
      %s65 = int_to_ptr.vmem [resolvable:$true] %s64
      %70 = dma.hbm_to_vmem [thread:$0]  %s5, 4096, %s65, [#allocation9], 256, 256, 16
    $region25: #{tpu_custom_call.1} parent=1 // pred_fallthru
      _
    // Predicated region
    $region26: #{tpu_custom_call.1} parent=1 // pred_check
      _
    $region27: #{tpu_custom_call.1} parent=1 // pred_check_branch
      %72 = sbr.rel (0) target = $region29
    $region28: #{tpu_custom_call.1} parent=1 // pred_region
      _
    $region29: #{tpu_custom_call.1} parent=1 // pred_fallthru
      _
    // Predicated region
    $region30: #{tpu_custom_call.1} parent=1 // pred_check
      _
    $region31: #{tpu_custom_call.1} parent=1 // pred_check_branch
      %74 = sbr.rel (0) target = $region33
    $region32: #{tpu_custom_call.1} parent=1 // pred_region
      _
    $region33: #{tpu_custom_call.1} parent=1 // pred_fallthru
      _
    // Predicated region
    $region34: #{tpu_custom_call.1} parent=1 // pred_check
      _
    $region35: #{tpu_custom_call.1} parent=1 // pred_check_branch
      %76 = sbr.rel (0) target = $region37
    $region36: #{tpu_custom_call.1} parent=1 // pred_region
      %77 = dma.done [#allocation3], 128
    $region37: #{tpu_custom_call.1} parent=1 // pred_fallthru
      _
    // Predicated region
    $region38: #{tpu_custom_call.1} parent=1 // pred_check
      _
    $region39: #{tpu_custom_call.1} parent=1 // pred_check_branch
      %79 = sbr.rel (0) target = $region41
    $region40: #{tpu_custom_call.1} parent=1 // pred_region
      %80 = dma.done [#allocation6], 2048
    $region41: #{tpu_custom_call.1} parent=1 // pred_fallthru
      _
    // Predicated region
    $region42: #{tpu_custom_call.1} parent=1 // pred_check
      _
    $region43: #{tpu_custom_call.1} parent=1 // pred_check_branch
      %82 = sbr.rel (0) target = $region45
    $region44: #{tpu_custom_call.1} parent=1 // pred_region
      %83 = dma.done [#allocation6], 2048
    $region45: #{tpu_custom_call.1} parent=1 // pred_fallthru
      _
    // Predicated region
    $region46: #{tpu_custom_call.1} parent=1 // pred_check
      _
    $region47: #{tpu_custom_call.1} parent=1 // pred_check_branch
      %85 = sbr.rel (0) target = $region49
    $region48: #{tpu_custom_call.1} parent=1 // pred_region
      %86 = dma.done [#allocation9], 4096
    $region49: #{tpu_custom_call.1} parent=1 // pred_fallthru
      _
    %v87 = vld [vmem:[#allocation2] sm:$0xff]
    %v88 = vld [vmem:[#allocation5] sm:$0xff]
    %v89 = vld [vmem:[#allocation5 + $0x8] sm:$0xff]
    %v90 = vld [vmem:[#allocation5 + $0x10] sm:$0xff]
    %v91 = vld [vmem:[#allocation5 + $0x18] sm:$0xff]
    %v92 = vld [vmem:[#allocation5 + $0x20] sm:$0xff]
    %v93 = vld [vmem:[#allocation5 + $0x28] sm:$0xff]
    %v94 = vld [vmem:[#allocation5 + $0x30] sm:$0xff]
    %v95 = vld [vmem:[#allocation5 + $0x38] sm:$0xff]
    %v96 = vld [vmem:[#allocation5 + $0x40] sm:$0xff]
    %v97 = vld [vmem:[#allocation5 + $0x48] sm:$0xff]
    %v98 = vld [vmem:[#allocation5 + $0x50] sm:$0xff]
    %v99 = vld [vmem:[#allocation5 + $0x58] sm:$0xff]
    %v100 = vld [vmem:[#allocation5 + $0x60] sm:$0xff]
    %v101 = vld [vmem:[#allocation5 + $0x68] sm:$0xff]
    %v102 = vld [vmem:[#allocation5 + $0x70] sm:$0xff]
    %v103 = vld [vmem:[#allocation5 + $0x78] sm:$0xff]
    %v104 = vld [vmem:[%s2] sm:$0x1]
    %v106 = vlaneseq
    %v107 = vshrl.u32 %v106, 7
    %v108 = vsub.s32 0, %v107
    %v109 = vrot.slane %v104, %v108
    %111 = vmatprep.subr.mxu0 0.0
    %112 = vmatpush1.msra.mxu0 %v103
    %113 = vmatprep.subr.mxu0 0.0
    %114 = vmatpush1.msra.mxu0 %v102
    %115 = vmatprep.subr.mxu0 0.0
    %116 = vmatpush1.msra.mxu0 %v101
    %117 = vmatprep.subr.mxu0 0.0
    %118 = vmatpush1.msra.mxu0 %v100
    %119 = vmatprep.subr.mxu0 0.0
    %120 = vmatpush1.msra.mxu0 %v99
    %121 = vmatprep.subr.mxu0 0.0
    %122 = vmatpush1.msra.mxu0 %v98
    %123 = vmatprep.subr.mxu0 0.0
    %124 = vmatpush1.msra.mxu0 %v97
    %125 = vmatprep.subr.mxu0 0.0
    %126 = vmatpush1.msra.mxu0 %v96
    %127 = vmatprep.subr.mxu0 0.0
    %128 = vmatpush1.msra.mxu0 %v95
    %129 = vmatprep.subr.mxu0 0.0
    %130 = vmatpush1.msra.mxu0 %v94
    %131 = vmatprep.subr.mxu0 0.0
    %132 = vmatpush1.msra.mxu0 %v93
    %133 = vmatprep.subr.mxu0 0.0
    %134 = vmatpush1.msra.mxu0 %v92
    %135 = vmatprep.subr.mxu0 0.0
    %136 = vmatpush1.msra.mxu0 %v91
    %137 = vmatprep.subr.mxu0 0.0
    %138 = vmatpush1.msra.mxu0 %v90
    %139 = vmatprep.subr.mxu0 0.0
    %140 = vmatpush1.msra.mxu0 %v89
    %141 = vmatprep.subr.mxu0 0.0
    %142 = vmatpush1.msra.mxu0 %v88
    %143 = vmatprep.subr.mxu0 0.0
    %144 = vmatpush2.msra.mxu0 0.0
    %145 = vmatprep.subr.mxu0 0.0
    %146 = vmatpush2.msra.mxu0 0.0
    %147 = vmatprep.subr.mxu0 0.0
    %148 = vmatpush2.msra.mxu0 0.0
    %149 = vmatprep.subr.mxu0 0.0
    %150 = vmatpush2.msra.mxu0 0.0
    %151 = vmatprep.subr.mxu0 0.0
    %152 = vmatpush2.msra.mxu0 0.0
    %153 = vmatprep.subr.mxu0 0.0
    %154 = vmatpush2.msra.mxu0 0.0
    %155 = vmatprep.subr.mxu0 0.0
    %156 = vmatpush2.msra.mxu0 0.0
    %157 = vmatprep.subr.mxu0 0.0
    %158 = vmatpush2.msra.mxu0 0.0
    %159 = vmatprep.subr.mxu0 0.0
    %160 = vmatpush2.msra.mxu0 0.0
    %161 = vmatprep.subr.mxu0 0.0
    %162 = vmatpush2.msra.mxu0 0.0
    %163 = vmatprep.subr.mxu0 0.0
    %164 = vmatpush2.msra.mxu0 0.0
    %165 = vmatprep.subr.mxu0 0.0
    %166 = vmatpush2.msra.mxu0 0.0
    %167 = vmatprep.subr.mxu0 0.0
    %168 = vmatpush2.msra.mxu0 0.0
    %169 = vmatprep.subr.mxu0 0.0
    %170 = vmatpush2.msra.mxu0 0.0
    %171 = vmatprep.subr.mxu0 0.0
    %172 = vmatpush2.msra.mxu0 0.0
    %173 = vmatprep.subr.mxu0 0.0
    %174 = vmatpush2.msra.mxu0 0.0
    %175 = vmatprep.mubr.f32.mxu0 0.0
    %176 = vmatmul.mubr.f32.gmra.mxu0 %v87
    %v177 = vpop.f32.mrf.mxu0
    %v178 = vadd.f32 %v109, %v177
    %v179 = vpop.f32.mrf.mxu0
    %180 = vdwg.mxu0
    %v181 = vmax.f32 %v178, 0.0
    %v182 = vld [vmem:[#allocation7] sm:$0xff]
    %v183 = vld [vmem:[#allocation7 + $0x8] sm:$0xff]
    %v184 = vld [vmem:[#allocation7 + $0x10] sm:$0xff]
    %v185 = vld [vmem:[#allocation7 + $0x18] sm:$0xff]
    %v186 = vld [vmem:[#allocation7 + $0x20] sm:$0xff]
    %v187 = vld [vmem:[#allocation7 + $0x28] sm:$0xff]
    %v188 = vld [vmem:[#allocation7 + $0x30] sm:$0xff]
    %v189 = vld [vmem:[#allocation7 + $0x38] sm:$0xff]
    %v190 = vld [vmem:[#allocation7 + $0x40] sm:$0xff]
    %v191 = vld [vmem:[#allocation7 + $0x48] sm:$0xff]
    %v192 = vld [vmem:[#allocation7 + $0x50] sm:$0xff]
    %v193 = vld [vmem:[#allocation7 + $0x58] sm:$0xff]
    %v194 = vld [vmem:[#allocation7 + $0x60] sm:$0xff]
    %v195 = vld [vmem:[#allocation7 + $0x68] sm:$0xff]
    %v196 = vld [vmem:[#allocation7 + $0x70] sm:$0xff]
    %v197 = vld [vmem:[#allocation7 + $0x78] sm:$0xff]
    %v198 = vld [vmem:[%s4] sm:$0x1]
    %v200 = vlaneseq
    %v201 = vshrl.u32 %v200, 7
    %v202 = vsub.s32 0, %v201
    %v203 = vrot.slane %v198, %v202
    %205 = vmatprep.subr.mxu0 0.0
    %206 = vmatpush1.msra.mxu0 %v197
    %207 = vmatprep.subr.mxu0 0.0
    %208 = vmatpush1.msra.mxu0 %v196
    %209 = vmatprep.subr.mxu0 0.0
    %210 = vmatpush1.msra.mxu0 %v195
    %211 = vmatprep.subr.mxu0 0.0
    %212 = vmatpush1.msra.mxu0 %v194
    %213 = vmatprep.subr.mxu0 0.0
    %214 = vmatpush1.msra.mxu0 %v193
    %215 = vmatprep.subr.mxu0 0.0
    %216 = vmatpush1.msra.mxu0 %v192
    %217 = vmatprep.subr.mxu0 0.0
    %218 = vmatpush1.msra.mxu0 %v191
    %219 = vmatprep.subr.mxu0 0.0
    %220 = vmatpush1.msra.mxu0 %v190
    %221 = vmatprep.subr.mxu0 0.0
    %222 = vmatpush1.msra.mxu0 %v189
    %223 = vmatprep.subr.mxu0 0.0
    %224 = vmatpush1.msra.mxu0 %v188
    %225 = vmatprep.subr.mxu0 0.0
    %226 = vmatpush1.msra.mxu0 %v187
    %227 = vmatprep.subr.mxu0 0.0
    %228 = vmatpush1.msra.mxu0 %v186
    %229 = vmatprep.subr.mxu0 0.0
    %230 = vmatpush1.msra.mxu0 %v185
    %231 = vmatprep.subr.mxu0 0.0
    %232 = vmatpush1.msra.mxu0 %v184
    %233 = vmatprep.subr.mxu0 0.0
    %234 = vmatpush1.msra.mxu0 %v183
    %235 = vmatprep.subr.mxu0 0.0
    %236 = vmatpush1.msra.mxu0 %v182
    %237 = vmatprep.subr.mxu0 0.0
    %238 = vmatpush2.msra.mxu0 0.0
    %239 = vmatprep.subr.mxu0 0.0
    %240 = vmatpush2.msra.mxu0 0.0
    %241 = vmatprep.subr.mxu0 0.0
    %242 = vmatpush2.msra.mxu0 0.0
    %243 = vmatprep.subr.mxu0 0.0
    %244 = vmatpush2.msra.mxu0 0.0
    %245 = vmatprep.subr.mxu0 0.0
    %246 = vmatpush2.msra.mxu0 0.0
    %247 = vmatprep.subr.mxu0 0.0
    %248 = vmatpush2.msra.mxu0 0.0
    %249 = vmatprep.subr.mxu0 0.0
    %250 = vmatpush2.msra.mxu0 0.0
    %251 = vmatprep.subr.mxu0 0.0
    %252 = vmatpush2.msra.mxu0 0.0
    %253 = vmatprep.subr.mxu0 0.0
    %254 = vmatpush2.msra.mxu0 0.0
    %255 = vmatprep.subr.mxu0 0.0
    %256 = vmatpush2.msra.mxu0 0.0
    %257 = vmatprep.subr.mxu0 0.0
    %258 = vmatpush2.msra.mxu0 0.0
    %259 = vmatprep.subr.mxu0 0.0
    %260 = vmatpush2.msra.mxu0 0.0
    %261 = vmatprep.subr.mxu0 0.0
    %262 = vmatpush2.msra.mxu0 0.0
    %263 = vmatprep.subr.mxu0 0.0
    %264 = vmatpush2.msra.mxu0 0.0
    %265 = vmatprep.subr.mxu0 0.0
    %266 = vmatpush2.msra.mxu0 0.0
    %267 = vmatprep.subr.mxu0 0.0
    %268 = vmatpush2.msra.mxu0 0.0
    %269 = vmatprep.mubr.f32.mxu0 0.0
    %270 = vmatmul.mubr.f32.gmra.mxu0 %v181
    %v271 = vpop.f32.mrf.mxu0
    %v272 = vadd.f32 %v203, %v271
    %v273 = vpop.f32.mrf.mxu0
    %274 = vdwg.mxu0
    %v275 = vmax.f32 %v272, 0.0
    %v276 = vld [vmem:[#allocation8] sm:$0xff]
    %v277 = vld [vmem:[#allocation8 + $0x8] sm:$0xff]
    %v278 = vld [vmem:[#allocation8 + $0x10] sm:$0xff]
    %v279 = vld [vmem:[#allocation8 + $0x18] sm:$0xff]
    %v280 = vld [vmem:[#allocation8 + $0x20] sm:$0xff]
    %v281 = vld [vmem:[#allocation8 + $0x28] sm:$0xff]
    %v282 = vld [vmem:[#allocation8 + $0x30] sm:$0xff]
    %v283 = vld [vmem:[#allocation8 + $0x38] sm:$0xff]
    %v284 = vld [vmem:[#allocation8 + $0x40] sm:$0xff]
    %v285 = vld [vmem:[#allocation8 + $0x48] sm:$0xff]
    %v286 = vld [vmem:[#allocation8 + $0x50] sm:$0xff]
    %v287 = vld [vmem:[#allocation8 + $0x58] sm:$0xff]
    %v288 = vld [vmem:[#allocation8 + $0x60] sm:$0xff]
    %v289 = vld [vmem:[#allocation8 + $0x68] sm:$0xff]
    %v290 = vld [vmem:[#allocation8 + $0x70] sm:$0xff]
    %v291 = vld [vmem:[#allocation8 + $0x78] sm:$0xff]
    %v292 = vld [vmem:[#allocation8 + $0x80] sm:$0xff]
    %v293 = vld [vmem:[#allocation8 + $0x88] sm:$0xff]
    %v294 = vld [vmem:[#allocation8 + $0x90] sm:$0xff]
    %v295 = vld [vmem:[#allocation8 + $0x98] sm:$0xff]
    %v296 = vld [vmem:[#allocation8 + $0xa0] sm:$0xff]
    %v297 = vld [vmem:[#allocation8 + $0xa8] sm:$0xff]
    %v298 = vld [vmem:[#allocation8 + $0xb0] sm:$0xff]
    %v299 = vld [vmem:[#allocation8 + $0xb8] sm:$0xff]
    %v300 = vld [vmem:[#allocation8 + $0xc0] sm:$0xff]
    %v301 = vld [vmem:[#allocation8 + $0xc8] sm:$0xff]
    %v302 = vld [vmem:[#allocation8 + $0xd0] sm:$0xff]
    %v303 = vld [vmem:[#allocation8 + $0xd8] sm:$0xff]
    %v304 = vld [vmem:[#allocation8 + $0xe0] sm:$0xff]
    %v305 = vld [vmem:[#allocation8 + $0xe8] sm:$0xff]
    %v306 = vld [vmem:[#allocation8 + $0xf0] sm:$0xff]
    %v307 = vld [vmem:[#allocation8 + $0xf8] sm:$0xff]
    %v308 = vld [vmem:[%s6] sm:$0x3]
    %v310 = vlaneseq
    %v311 = vshrl.u32 %v310, 7
    %v312 = vsub.s32 0, %v311
    %v313 = vrot.slane %v308, %v312
    %v314 = vlaneseq
    %v315 = vshrl.u32 %v314, 7
    %v316 = vsub.s32 1, %v315
    %v317 = vrot.slane %v308, %v316
    %320 = vmatprep.subr.mxu0 %v307
    %321 = vmatpush1.msra.mxu0 %v306
    %322 = vmatprep.subr.mxu0 %v305
    %323 = vmatpush1.msra.mxu0 %v304
    %324 = vmatprep.subr.mxu0 %v303
    %325 = vmatpush1.msra.mxu0 %v302
    %326 = vmatprep.subr.mxu0 %v301
    %327 = vmatpush1.msra.mxu0 %v300
    %328 = vmatprep.subr.mxu0 %v299
    %329 = vmatpush1.msra.mxu0 %v298
    %330 = vmatprep.subr.mxu0 %v297
    %331 = vmatpush1.msra.mxu0 %v296
    %332 = vmatprep.subr.mxu0 %v295
    %333 = vmatpush1.msra.mxu0 %v294
    %334 = vmatprep.subr.mxu0 %v293
    %335 = vmatpush1.msra.mxu0 %v292
    %336 = vmatprep.subr.mxu0 %v291
    %337 = vmatpush1.msra.mxu0 %v290
    %338 = vmatprep.subr.mxu0 %v289
    %339 = vmatpush1.msra.mxu0 %v288
    %340 = vmatprep.subr.mxu0 %v287
    %341 = vmatpush1.msra.mxu0 %v286
    %342 = vmatprep.subr.mxu0 %v285
    %343 = vmatpush1.msra.mxu0 %v284
    %344 = vmatprep.subr.mxu0 %v283
    %345 = vmatpush1.msra.mxu0 %v282
    %346 = vmatprep.subr.mxu0 %v281
    %347 = vmatpush1.msra.mxu0 %v280
    %348 = vmatprep.subr.mxu0 %v279
    %349 = vmatpush1.msra.mxu0 %v278
    %350 = vmatprep.subr.mxu0 %v277
    %351 = vmatpush1.msra.mxu0 %v276
    %352 = vmatprep.subr.mxu0 0.0
    %353 = vmatpush2.msra.mxu0 0.0
    %354 = vmatprep.subr.mxu0 0.0
    %355 = vmatpush2.msra.mxu0 0.0
    %356 = vmatprep.subr.mxu0 0.0
    %357 = vmatpush2.msra.mxu0 0.0
    %358 = vmatprep.subr.mxu0 0.0
    %359 = vmatpush2.msra.mxu0 0.0
    %360 = vmatprep.subr.mxu0 0.0
    %361 = vmatpush2.msra.mxu0 0.0
    %362 = vmatprep.subr.mxu0 0.0
    %363 = vmatpush2.msra.mxu0 0.0
    %364 = vmatprep.subr.mxu0 0.0
    %365 = vmatpush2.msra.mxu0 0.0
    %366 = vmatprep.subr.mxu0 0.0
    %367 = vmatpush2.msra.mxu0 0.0
    %368 = vmatprep.subr.mxu0 0.0
    %369 = vmatpush2.msra.mxu0 0.0
    %370 = vmatprep.subr.mxu0 0.0
    %371 = vmatpush2.msra.mxu0 0.0
    %372 = vmatprep.subr.mxu0 0.0
    %373 = vmatpush2.msra.mxu0 0.0
    %374 = vmatprep.subr.mxu0 0.0
    %375 = vmatpush2.msra.mxu0 0.0
    %376 = vmatprep.subr.mxu0 0.0
    %377 = vmatpush2.msra.mxu0 0.0
    %378 = vmatprep.subr.mxu0 0.0
    %379 = vmatpush2.msra.mxu0 0.0
    %380 = vmatprep.subr.mxu0 0.0
    %381 = vmatpush2.msra.mxu0 0.0
    %382 = vmatprep.subr.mxu0 0.0
    %383 = vmatpush2.msra.mxu0 0.0
    %384 = vmatprep.mubr.f32.mxu0 0.0
    %385 = vmatmul.mubr.f32.gmra.mxu0 %v275
    %v386 = vpop.f32.mrf.mxu0
    %v387 = vadd.f32 %v313, %v386
    %v388 = vpop.f32.mrf.mxu0
    %v389 = vadd.f32 %v317, %v388
    %390 = vdwg.mxu0
    %v391 = vmul.f32 %v389, 0.5
    %v392 = vmul.f32 %v391, 1.442695
    %v393 = vpow.pop %v392
    %v394 = vld [vmem:[%s7] sm:$0xff]
    %v395 = vmul.f32 %v394, %v393
    %v396 = vadd.f32 %v387, %v395
    %397 = vst [vmem:[#allocation10] sm:$0xff] %v396
    %398 = vst [vmem:[#allocation11] sm:$0xff] %v387
    %399 = vst [vmem:[#allocation13] sm:$0xff] %v389
    // Predicated region
    $region50: #{tpu_custom_call.1} parent=1 // pred_check
      _
    $region51: #{tpu_custom_call.1} parent=1 // pred_check_branch
      %401 = sbr.rel (0) target = $region53
    $region52: #{tpu_custom_call.1} parent=1 // pred_region
      %s403 = ssub.s32 128, 128
      %404 = vsyncadd [#allocation4], %s403
      %s406 = sshll.u32 [#allocation10], 4
      %s407 = int_to_ptr.vmem [resolvable:$true] %s406
      %409 = dma.vmem_to_hbm [thread:$0]  %s407, 128, %s8, [#allocation4]
    $region53: #{tpu_custom_call.1} parent=1 // pred_fallthru
      _
    // Predicated region
    $region54: #{tpu_custom_call.1} parent=1 // pred_check
      _
    $region55: #{tpu_custom_call.1} parent=1 // pred_check_branch
      %411 = sbr.rel (0) target = $region57
    $region56: #{tpu_custom_call.1} parent=1 // pred_region
      %s413 = ssub.s32 128, 128
      %414 = vsyncadd [#allocation12], %s413
      %s416 = sshll.u32 [#allocation11], 4
      %s417 = int_to_ptr.vmem [resolvable:$true] %s416
      %419 = dma.vmem_to_hbm [thread:$0]  %s417, 128, %s9, [#allocation12]
    $region57: #{tpu_custom_call.1} parent=1 // pred_fallthru
      _
    // Predicated region
    $region58: #{tpu_custom_call.1} parent=1 // pred_check
      _
    $region59: #{tpu_custom_call.1} parent=1 // pred_check_branch
      %421 = sbr.rel (0) target = $region61
    $region60: #{tpu_custom_call.1} parent=1 // pred_region
      %s423 = ssub.s32 128, 128
      %424 = vsyncadd [#allocation12], %s423
      %s426 = sshll.u32 [#allocation13], 4
      %s427 = int_to_ptr.vmem [resolvable:$true] %s426
      %429 = dma.vmem_to_hbm [thread:$0]  %s427, 128, %s10, [#allocation12]
    $region61: #{tpu_custom_call.1} parent=1 // pred_fallthru
      _
    // Predicated region
    $region62: #{tpu_custom_call.1} parent=1 // pred_check
      _
    $region63: #{tpu_custom_call.1} parent=1 // pred_check_branch
      %431 = sbr.rel (0) target = $region65
    $region64: #{tpu_custom_call.1} parent=1 // pred_region
      %432 = dma.done [#allocation4], 128
    $region65: #{tpu_custom_call.1} parent=1 // pred_fallthru
      _
    // Predicated region
    $region66: #{tpu_custom_call.1} parent=1 // pred_check
      _
    $region67: #{tpu_custom_call.1} parent=1 // pred_check_branch
      %434 = sbr.rel (0) target = $region69
    $region68: #{tpu_custom_call.1} parent=1 // pred_region
      %435 = dma.done [#allocation12], 128
    $region69: #{tpu_custom_call.1} parent=1 // pred_fallthru
      _
    // Predicated region
    $region70: #{tpu_custom_call.1} parent=1 // pred_check
      _
    $region71: #{tpu_custom_call.1} parent=1 // pred_check_branch
      %437 = sbr.rel (0) target = $region73
    $region72: #{tpu_custom_call.1} parent=1 // pred_region
      %438 = dma.done [#allocation12], 128
    $region73: #{tpu_custom_call.1} parent=1 // pred_fallthru
      _
    %439 = vsyncpa [#allocation3], 1
    %440 = vsyncpa [#allocation6], 1
    %441 = vsyncpa [#allocation9], 1
    %442 = vsyncpa [#allocation4], 1
    %443 = vsyncpa [#allocation12], 1

</llo_original>
